<compile_context>
chip_gen: v6e
topology: v6e:2x2x1
jax: 0.10.0
libtpu: 0.0.40
codegen_flags: <defaults>
</compile_context>

<pallas_src>
import math

import jax
import jax.numpy as jnp
from jax import lax
from jax.experimental import pallas as pl
from jax.experimental.pallas import tpu as pltpu


# ----------------------------------------------------------------------------
# helpers
# ----------------------------------------------------------------------------
def find_multiple(n: int, k: int) -> int:
    return n if n % k == 0 else n + k - n % k


def _pick_tile(n: int, preferred: int, quantum: int) -> int:
    """Largest tile <= preferred that divides n and is a multiple of quantum.

    Falls back to the full extent n (always a legal BlockSpec block) when n is
    small or no such divisor exists.  Evenly-dividing tiles avoid any wrapper
    side pad/concatenate/slice of the activations.
    """
    if n <= preferred:
        return n
    t = (preferred // quantum) * quantum
    while t >= quantum:
        if n % t == 0:
            return t
        t -= quantum
    return n


def _vmem_limit_bytes(*tile_shapes, dtype_bytes: int = 4) -> int:
    """Scoped-VMEM request: double-buffered tiles + headroom, capped at 64 MiB
    so the same request is valid on v5e/v6e (128 MiB) and v7x (64 MiB)."""
    elems = sum(int(math.prod(s)) for s in tile_shapes)
    need = 2 * elems * dtype_bytes          # double buffering of every tile
    need = int(need * 1.25) + (2 << 20)     # headroom
    return int(min(max(need, 16 << 20), 64 << 20))


# ----------------------------------------------------------------------------
# kernel 1: fused RMSNorm + matmul  (used for the QKV projection)
# ----------------------------------------------------------------------------
def _rmsnorm_matmul_kernel(eps):
    def kernel(x_ref, g_ref, w_ref, o_ref):
        # x_ref: (tm, D)  g_ref: (1, D)  w_ref: (D, tn)  o_ref: (tm, tn)
        x = x_ref[...].astype(jnp.float32)
        ms = jnp.mean(x * x, axis=-1, keepdims=True)
        xn = x * lax.rsqrt(ms + eps) * g_ref[...].astype(jnp.float32)
        o_ref[...] = jnp.dot(
            xn, w_ref[...].astype(jnp.float32),
            preferred_element_type=jnp.float32).astype(o_ref.dtype)
    return kernel


def rmsnorm_matmul(x2d, norm_w, w_t, eps):
    """out = RMSNorm(x2d; norm_w, eps) @ w_t, all math in f32, one cast at store."""
    R, D = x2d.shape
    N = w_t.shape[1]
    tm = _pick_tile(R, 256, 8)
    tn = _pick_tile(N, 512, 128)
    return pl.pallas_call(
        _rmsnorm_matmul_kernel(eps),
        out_shape=jax.ShapeDtypeStruct((R, N), x2d.dtype),
        grid_spec=pltpu.PrefetchScalarGridSpec(
            num_scalar_prefetch=0,
            grid=(R // tm, N // tn),
            in_specs=[
                pl.BlockSpec((tm, D), lambda i, j: (i, 0)),
                pl.BlockSpec((1, D), lambda i, j: (0, 0)),
                pl.BlockSpec((D, tn), lambda i, j: (0, j)),
            ],
            out_specs=pl.BlockSpec((tm, tn), lambda i, j: (i, j)),
        ),
        compiler_params=pltpu.CompilerParams(
            dimension_semantics=("parallel", "parallel"),
            vmem_limit_bytes=_vmem_limit_bytes((tm, D), (1, D), (D, tn), (tm, tn))),
    )(x2d, norm_w.reshape(1, D), w_t)


# ----------------------------------------------------------------------------
# kernel 2: fused RMSNorm + two matmuls (FFN W1 / W3 share one norm pass)
# ----------------------------------------------------------------------------
def _rmsnorm_matmul2_kernel(eps):
    def kernel(x_ref, g_ref, w1_ref, w3_ref, o1_ref, o3_ref):
        x = x_ref[...].astype(jnp.float32)
        ms = jnp.mean(x * x, axis=-1, keepdims=True)
        xn = x * lax.rsqrt(ms + eps) * g_ref[...].astype(jnp.float32)
        o1_ref[...] = jnp.dot(
            xn, w1_ref[...].astype(jnp.float32),
            preferred_element_type=jnp.float32).astype(o1_ref.dtype)
        o3_ref[...] = jnp.dot(
            xn, w3_ref[...].astype(jnp.float32),
            preferred_element_type=jnp.float32).astype(o3_ref.dtype)
    return kernel


def rmsnorm_matmul2(x2d, norm_w, w1_t, w3_t, eps):
    R, D = x2d.shape
    N = w1_t.shape[1]
    tm = _pick_tile(R, 256, 8)
    tn = _pick_tile(N, 512, 128)
    out_sd = jax.ShapeDtypeStruct((R, N), x2d.dtype)
    return pl.pallas_call(
        _rmsnorm_matmul2_kernel(eps),
        out_shape=(out_sd, out_sd),
        grid_spec=pltpu.PrefetchScalarGridSpec(
            num_scalar_prefetch=0,
            grid=(R // tm, N // tn),
            in_specs=[
                pl.BlockSpec((tm, D), lambda i, j: (i, 0)),
                pl.BlockSpec((1, D), lambda i, j: (0, 0)),
                pl.BlockSpec((D, tn), lambda i, j: (0, j)),
                pl.BlockSpec((D, tn), lambda i, j: (0, j)),
            ],
            out_specs=[
                pl.BlockSpec((tm, tn), lambda i, j: (i, j)),
                pl.BlockSpec((tm, tn), lambda i, j: (i, j)),
            ],
        ),
        compiler_params=pltpu.CompilerParams(
            dimension_semantics=("parallel", "parallel"),
            vmem_limit_bytes=_vmem_limit_bytes(
                (tm, D), (1, D), (D, tn), (D, tn), (tm, tn), (tm, tn))),
    )(x2d, norm_w.reshape(1, D), w1_t, w3_t)


# ----------------------------------------------------------------------------
# kernel 3: matmul + residual add (Wo projection)
# ----------------------------------------------------------------------------
def _matmul_residual_kernel(y_ref, w_ref, r_ref, o_ref):
    acc = jnp.dot(y_ref[...].astype(jnp.float32), w_ref[...].astype(jnp.float32),
                  preferred_element_type=jnp.float32)
    o_ref[...] = (acc + r_ref[...].astype(jnp.float32)).astype(o_ref.dtype)


def matmul_residual(y2d, w_t, res2d):
    R, K = y2d.shape
    N = w_t.shape[1]
    tm = _pick_tile(R, 256, 8)
    tn = _pick_tile(N, 512, 128)
    return pl.pallas_call(
        _matmul_residual_kernel,
        out_shape=jax.ShapeDtypeStruct((R, N), res2d.dtype),
        grid_spec=pltpu.PrefetchScalarGridSpec(
            num_scalar_prefetch=0,
            grid=(R // tm, N // tn),
            in_specs=[
                pl.BlockSpec((tm, K), lambda i, j: (i, 0)),
                pl.BlockSpec((K, tn), lambda i, j: (0, j)),
                pl.BlockSpec((tm, tn), lambda i, j: (i, j)),
            ],
            out_specs=pl.BlockSpec((tm, tn), lambda i, j: (i, j)),
        ),
        compiler_params=pltpu.CompilerParams(
            dimension_semantics=("parallel", "parallel"),
            vmem_limit_bytes=_vmem_limit_bytes((tm, K), (K, tn), (tm, tn), (tm, tn))),
    )(y2d, w_t, res2d)


# ----------------------------------------------------------------------------
# kernel 4: SwiGLU + matmul + residual add (FFN W2 projection)
# ----------------------------------------------------------------------------
def _swiglu_matmul_residual_kernel(h1_ref, h3_ref, w_ref, r_ref, o_ref):
    h1 = h1_ref[...].astype(jnp.float32)
    h3 = h3_ref[...].astype(jnp.float32)
    g = (h1 * jax.nn.sigmoid(h1)) * h3            # SiLU(h1) * h3, in f32
    acc = jnp.dot(g, w_ref[...].astype(jnp.float32),
                  preferred_element_type=jnp.float32)
    o_ref[...] = (acc + r_ref[...].astype(jnp.float32)).astype(o_ref.dtype)


def swiglu_matmul_residual(h1, h3, w_t, res2d):
    R, K = h1.shape
    N = w_t.shape[1]
    tm = _pick_tile(R, 256, 8)
    tn = _pick_tile(N, 512, 128)
    return pl.pallas_call(
        _swiglu_matmul_residual_kernel,
        out_shape=jax.ShapeDtypeStruct((R, N), res2d.dtype),
        grid_spec=pltpu.PrefetchScalarGridSpec(
            num_scalar_prefetch=0,
            grid=(R // tm, N // tn),
            in_specs=[
                pl.BlockSpec((tm, K), lambda i, j: (i, 0)),
                pl.BlockSpec((tm, K), lambda i, j: (i, 0)),
                pl.BlockSpec((K, tn), lambda i, j: (0, j)),
                pl.BlockSpec((tm, tn), lambda i, j: (i, j)),
            ],
            out_specs=pl.BlockSpec((tm, tn), lambda i, j: (i, j)),
        ),
        compiler_params=pltpu.CompilerParams(
            dimension_semantics=("parallel", "parallel"),
            vmem_limit_bytes=_vmem_limit_bytes(
                (tm, K), (tm, K), (K, tn), (tm, tn), (tm, tn))),
    )(h1, h3, w_t, res2d)


# ----------------------------------------------------------------------------
# kernel 5: causal softmax attention, one (batch, head) per grid step
# ----------------------------------------------------------------------------
def _causal_attn_kernel(scale):
    def kernel(q_ref, k_ref, v_ref, o_ref):
        q = q_ref[0].astype(jnp.float32)          # (S, Dh)
        k = k_ref[0].astype(jnp.float32)
        v = v_ref[0].astype(jnp.float32)
        s = lax.dot_general(q, k, (((1,), (1,)), ((), ())),
                            preferred_element_type=jnp.float32) * scale  # (S, S)
        row = lax.broadcasted_iota(jnp.int32, s.shape, 0)
        col = lax.broadcasted_iota(jnp.int32, s.shape, 1)
        s = jnp.where(col <= row, s, -jnp.inf)
        m = jnp.max(s, axis=-1, keepdims=True)
        p = jnp.exp(s - m)
        l = jnp.sum(p, axis=-1, keepdims=True)
        o = jnp.dot(p, v, preferred_element_type=jnp.float32) / l
        o_ref[0] = o.astype(o_ref.dtype)
    return kernel


def causal_attention(q, k, v, scale):
    """q, k, v: (B*H, S, Dh). Whole (S, S) score tile lives in VMEM —
    appropriate for block_size-scale sequences (flash-style kernel otherwise)."""
    BH, S, Dh = q.shape
    return pl.pallas_call(
        _causal_attn_kernel(scale),
        out_shape=jax.ShapeDtypeStruct((BH, S, Dh), q.dtype),
        grid_spec=pltpu.PrefetchScalarGridSpec(
            num_scalar_prefetch=0,
            grid=(BH,),
            in_specs=[
                pl.BlockSpec((1, S, Dh), lambda i: (i, 0, 0)),
                pl.BlockSpec((1, S, Dh), lambda i: (i, 0, 0)),
                pl.BlockSpec((1, S, Dh), lambda i: (i, 0, 0)),
            ],
            out_specs=pl.BlockSpec((1, S, Dh), lambda i: (i, 0, 0)),
        ),
        compiler_params=pltpu.CompilerParams(
            dimension_semantics=("parallel",),
            vmem_limit_bytes=_vmem_limit_bytes(
                (S, Dh), (S, Dh), (S, Dh), (S, Dh), (S, S))),
    )(q, k, v)


# ----------------------------------------------------------------------------
# rotary embedding (plain-JAX glue, matches the PyTorch reference exactly)
# ----------------------------------------------------------------------------
def apply_rotary_emb(x, freqs_cis):
    """x: (B, S, H, Dh); freqs_cis: (S, Dh//2, 2) — interleaved-pair rotary."""
    B, S, H, Dh = x.shape
    xf = x.astype(jnp.float32).reshape(B, S, H, Dh // 2, 2)
    fc = freqs_cis.astype(jnp.float32).reshape(1, S, 1, Dh // 2, 2)
    real = xf[..., 0] * fc[..., 0] - xf[..., 1] * fc[..., 1]
    imag = xf[..., 1] * fc[..., 0] + xf[..., 0] * fc[..., 1]
    return jnp.stack([real, imag], axis=-1).reshape(B, S, H, Dh).astype(x.dtype)


def precompute_freqs_cis(seq_len, head_dim, base=10000.0):
    freqs = 1.0 / (base ** (jnp.arange(0, head_dim, 2, dtype=jnp.float32) / head_dim))
    t = jnp.arange(seq_len, dtype=jnp.float32)
    ang = jnp.outer(t, freqs)                           # (S, Dh//2)
    return jnp.stack([jnp.cos(ang), jnp.sin(ang)], axis=-1)  # (S, Dh//2, 2)


# ----------------------------------------------------------------------------
# TransformerBlock forward (Pallas path)
# ----------------------------------------------------------------------------
def transformer_block(x, params, freqs_cis, *, n_head, n_kv_head, eps):
    """h   = x + Wo( attn( rope(split(Wqkv(RMSNorm(x)))) ) )
       out = h + W2( SiLU(W1(RMSNorm(h))) * W3(RMSNorm(h)) )"""
    B, S, D = x.shape
    head_dim = D // n_head
    kv_dim = n_kv_head * head_dim
    x2d = x.reshape(B * S, D)

    # attention branch: fused attention_norm + QKV projection
    qkv = rmsnorm_matmul(x2d, params["attn_norm_w"], params["wqkv_t"], eps)
    q, k, v = jnp.split(qkv, [D, D + kv_dim], axis=-1)
    q = apply_rotary_emb(q.reshape(B, S, n_head, head_dim), freqs_cis)
    k = apply_rotary_emb(k.reshape(B, S, n_kv_head, head_dim), freqs_cis)
    v = v.reshape(B, S, n_kv_head, head_dim)

    # (B, S, H, Dh) -> (B, H, S, Dh); GQA repeat_interleave over KV heads
    q = q.transpose(0, 2, 1, 3)
    k = k.transpose(0, 2, 1, 3)
    v = v.transpose(0, 2, 1, 3)
    rep = n_head // n_kv_head
    if rep > 1:
        k = jnp.repeat(k, rep, axis=1)
        v = jnp.repeat(v, rep, axis=1)

    scale = 1.0 / math.sqrt(head_dim)
    attn = causal_attention(q.reshape(B * n_head, S, head_dim),
                            k.reshape(B * n_head, S, head_dim),
                            v.reshape(B * n_head, S, head_dim), scale)
    attn = attn.reshape(B, n_head, S, head_dim).transpose(0, 2, 1, 3)
    attn = attn.reshape(B * S, D).astype(x2d.dtype)

    # output projection + first residual (fused)
    h2d = matmul_residual(attn, params["wo_t"], x2d)

    # FFN branch: fused ffn_norm + W1/W3, then SwiGLU + W2 + second residual
    h1, h3 = rmsnorm_matmul2(h2d, params["ffn_norm_w"],
                             params["w1_t"], params["w3_t"], eps)
    out2d = swiglu_matmul_residual(h1, h3, params["w2_t"], h2d)
    return out2d.reshape(B, S, D)


# ----------------------------------------------------------------------------
# pure-JAX reference (mirrors the PyTorch math, eval mode)
# ----------------------------------------------------------------------------
def _rmsnorm_ref(x, w, eps):
    xf = x.astype(jnp.float32)
    n = xf * lax.rsqrt(jnp.mean(xf * xf, axis=-1, keepdims=True) + eps)
    return n.astype(x.dtype) * w


def transformer_block_ref(x, params, freqs_cis, *, n_head, n_kv_head, eps):
    B, S, D = x.shape
    head_dim = D // n_head
    kv_dim = n_kv_head * head_dim

    xn = _rmsnorm_ref(x, params["attn_norm_w"], eps)
    qkv = xn @ params["wqkv_t"]
    q, k, v = jnp.split(qkv, [D, D + kv_dim], axis=-1)
    q = apply_rotary_emb(q.reshape(B, S, n_head, head_dim), freqs_cis)
    k = apply_rotary_emb(k.reshape(B, S, n_kv_head, head_dim), freqs_cis)
    v = v.reshape(B, S, n_kv_head, head_dim)
    q, k, v = (t.transpose(0, 2, 1, 3) for t in (q, k, v))
    rep = n_head // n_kv_head
    if rep > 1:
        k = jnp.repeat(k, rep, axis=1)
        v = jnp.repeat(v, rep, axis=1)
    scale = 1.0 / math.sqrt(head_dim)
    s = jnp.einsum("bhqd,bhkd->bhqk",
                   q.astype(jnp.float32), k.astype(jnp.float32)) * scale
    causal = jnp.tril(jnp.ones((S, S), dtype=bool))
    s = jnp.where(causal[None, None], s, -jnp.inf)
    p = jax.nn.softmax(s, axis=-1)
    o = jnp.einsum("bhqk,bhkd->bhqd", p, v.astype(jnp.float32))
    o = o.transpose(0, 2, 1, 3).reshape(B, S, D).astype(x.dtype)
    h = x + o @ params["wo_t"]
    hn = _rmsnorm_ref(h, params["ffn_norm_w"], eps)
    h1 = hn @ params["w1_t"]
    h3 = hn @ params["w3_t"]
    return h + (jax.nn.silu(h1) * h3) @ params["w2_t"]


# ----------------------------------------------------------------------------
# demo / correctness check
# ----------------------------------------------------------------------------
if __name__ == "__main__":
    key = jax.random.PRNGKey(0)

    # small config consistent with the module: (batch, seq, dim) = (2, 8, 32)
    B, S = 2, 8
    dim, n_head, multiple_of = 32, 4, 32
    n_kv_head = n_head                      # config.n_kv_head = None -> n_head
    eps = 1e-5                              # ModelArgs.norm_eps
    head_dim = dim // n_head
    total_kv_dim = (n_head + 2 * n_kv_head) * head_dim
    hidden = find_multiple(int(2 * (4 * dim) / 3), multiple_of)

    keys = jax.random.split(key, 7)
    init = 0.02                             # ModelArgs.initializer_range
    x = jax.random.normal(keys[0], (B, S, dim), jnp.float32)
    params = {
        # RMSNorm weights initialize to ones in the PyTorch module
        "attn_norm_w": jnp.ones((dim,), jnp.float32),
        "ffn_norm_w": jnp.ones((dim,), jnp.float32),
        # Linear weights stored pre-transposed as (in, out) = W.T
        "wqkv_t": init * jax.random.normal(keys[1], (dim, total_kv_dim), jnp.float32),
        "wo_t": init * jax.random.normal(keys[2], (dim, dim), jnp.float32),
        "w1_t": init * jax.random.normal(keys[3], (dim, hidden), jnp.float32),
        "w3_t": init * jax.random.normal(keys[4], (dim, hidden), jnp.float32),
        "w2_t": init * jax.random.normal(keys[5], (hidden, dim), jnp.float32),
    }
    freqs_cis = precompute_freqs_cis(S, head_dim, base=10000.0)

    out = transformer_block(x, params, freqs_cis,
                            n_head=n_head, n_kv_head=n_kv_head, eps=eps)
    out = jax.block_until_ready(out)

    ref = transformer_block_ref(x, params, freqs_cis,
                                n_head=n_head, n_kv_head=n_kv_head, eps=eps)
    assert out.shape == x.shape
    err = float(jnp.max(jnp.abs(out - ref)))
    assert jnp.allclose(out, ref, atol=2e-4, rtol=2e-4), f"mismatch, max abs err={err}"

    print("KERNEL_OK")
</pallas_src>

<mosaic_0001>
module attributes {stable_mosaic.version = 11 : i64} {
  func.func @kernel(%arg0: i32, %arg1: i32, %arg2: memref<16x32xf32, #tpu.memory_space<vmem>>, %arg3: memref<1x32xf32, #tpu.memory_space<vmem>>, %arg4: memref<32x96xf32, #tpu.memory_space<vmem>>, %arg5: memref<16x96xf32, #tpu.memory_space<vmem>>) attributes {dimension_semantics = [#tpu.dimension_semantics<parallel>, #tpu.dimension_semantics<parallel>], iteration_bounds = array<i64: 1, 1>, scalar_prefetch = 0 : i64, scratch_operands = 0 : i64, tpu.core_type = #tpu.core_type<tc>, window_params = [{transform_indices = @transform_0, window_bounds = array<i64: 16, 32>}, {pipeline_mode = #tpu.pipeline_mode<synchronous>, transform_indices = @transform_1, window_bounds = array<i64: 1, 32>}, {transform_indices = @transform_2, window_bounds = array<i64: 32, 96>}, {transform_indices = @transform_3, window_bounds = array<i64: 16, 96>}]} {
    %c0 = arith.constant 0 : index
    %c0_0 = arith.constant 0 : index
    %0 = vector.load %arg2[%c0, %c0_0] : memref<16x32xf32, #tpu.memory_space<vmem>>, vector<16x32xf32>
    %1 = arith.mulf %0, %0 : vector<16x32xf32>
    %cst = arith.constant dense<0.000000e+00> : vector<16xf32>
    %2 = vector.multi_reduction <add>, %1, %cst [1] : vector<16x32xf32> to vector<16xf32>
    %3 = vector.shape_cast %2 : vector<16xf32> to vector<16x1xf32>
    %cst_1 = arith.constant 3.200000e+01 : f32
    %4 = vector.broadcast %cst_1 : f32 to vector<16x1xf32>
    %5 = arith.divf %3, %4 : vector<16x1xf32>
    %cst_2 = arith.constant 9.99999974E-6 : f32
    %6 = vector.broadcast %cst_2 : f32 to vector<16x1xf32>
    %7 = arith.addf %5, %6 : vector<16x1xf32>
    %8 = math.rsqrt %7 : vector<16x1xf32>
    %9 = vector.broadcast %8 : vector<16x1xf32> to vector<16x32xf32>
    %10 = arith.mulf %0, %9 : vector<16x32xf32>
    %c0_3 = arith.constant 0 : index
    %c0_4 = arith.constant 0 : index
    %11 = vector.load %arg3[%c0_3, %c0_4] : memref<1x32xf32, #tpu.memory_space<vmem>>, vector<1x32xf32>
    %12 = vector.broadcast %11 : vector<1x32xf32> to vector<16x32xf32>
    %13 = arith.mulf %10, %12 : vector<16x32xf32>
    %c0_5 = arith.constant 0 : index
    %c0_6 = arith.constant 0 : index
    %14 = vector.load %arg4[%c0_5, %c0_6] : memref<32x96xf32, #tpu.memory_space<vmem>>, vector<32x96xf32>
    %cst_7 = arith.constant dense<0.000000e+00> : vector<16x96xf32>
    %15 = tpu.matmul %13, %14, %cst_7 {dimension_numbers = #tpu.dot_dimension_numbers<[1], [0], [0], [1], [0, 0, 1, 1], [], []>} : vector<16x32xf32>, vector<32x96xf32>, vector<16x96xf32> -> vector<16x96xf32>
    %c0_8 = arith.constant 0 : index
    %c0_9 = arith.constant 0 : index
    %16 = vector.load %arg5[%c0_8, %c0_9] : memref<16x96xf32, #tpu.memory_space<vmem>>, vector<16x96xf32>
    tpu.vector_store %arg5[%c0_8, %c0_9], %15 {strides = array<i32>} : memref<16x96xf32, #tpu.memory_space<vmem>>, vector<16x96xf32>,
    return
  }
  func.func @transform_0(%arg0: i32, %arg1: i32) -> (i32, i32) {
    %c0_i32 = arith.constant 0 : i32
    %c0_i32_0 = arith.constant 0 : i32
    return %arg0, %c0_i32 : i32, i32
  }
  func.func @transform_1(%arg0: i32, %arg1: i32) -> (i32, i32) {
    %c0_i32 = arith.constant 0 : i32
    %c0_i32_0 = arith.constant 0 : i32
    %c0_i32_1 = arith.constant 0 : i32
    return %c0_i32, %c0_i32_0 : i32, i32
  }
  func.func @transform_2(%arg0: i32, %arg1: i32) -> (i32, i32) {
    %c0_i32 = arith.constant 0 : i32
    %c0_i32_0 = arith.constant 0 : i32
    return %c0_i32, %arg1 : i32, i32
  }
  func.func @transform_3(%arg0: i32, %arg1: i32) -> (i32, i32) {
    %c0_i32 = arith.constant 0 : i32
    return %arg0, %arg1 : i32, i32
  }
}

</mosaic_0001>

<llo_original>
// kernel: tpu_custom_call.1
$region0: #{tpu_custom_call.1}
  #allocation0 [shape = 'u32[]', space=smem, size = 0x4, offset = 0x4, fixed_abs, tag = 'smem constant byte address 0x4 - core index']
  #allocation1 [shape = 'u32[144,128]{1,0:T(1,128)}', space=vmem, size = 0x12000, scoped, tag = 'internal scratch']
  %s0 = inlined_call_operand.hbm [shape: f32[16,32], index: 0, kind: input, shape index: {}]
  %s1 = inlined_call_operand.vmem [shape: f32[1,32], index: 1, kind: input, shape index: {}]
  %s2 = inlined_call_operand.hbm [shape: f32[32,96], index: 2, kind: input, shape index: {}]
  %s3 = inlined_call_operand.hbm [shape: f32[16,96], index: 3, kind: output, shape index: {}]
  %s4 = sld [smem:[#allocation0]]
  $region30: #{tpu_custom_call.1} parent=0
    _
  %s6 = ssub.s32 1, %s4
  %s7 = scalar_select 0, %s6, %s4
  $region1: #{tpu_custom_call.1} parent=0
    #allocation2 [shape = 'u8[8192]{0}', space=vmem, size = 0x2000, scoped, tag = 'input window, operand 0, single buffered']
    #allocation3 [shape = 's32[1]{0}', space=sflag, size = 0x4, scoped, tag = 'scoped memory for tpu_custom_call.1']
    #allocation4 [shape = 's32[1]{0}', space=sflag, size = 0x4, scoped, tag = 'scoped memory for tpu_custom_call.1']
    #allocation5 [shape = 'u8[16384]{0}', space=vmem, size = 0x4000, scoped, tag = 'input window, operand 2, single buffered']
    #allocation6 [shape = 's32[1]{0}', space=sflag, size = 0x4, scoped, tag = 'scoped memory for tpu_custom_call.1']
    #allocation7 [shape = 'u8[8192]{0}', space=vmem, size = 0x2000, scoped, tag = 'output window, operand 0, single buffered']
    %8 = vsyncpa [#allocation3], 0
    %9 = vsyncpa [#allocation6], 0
    %10 = vsyncpa [#allocation4], 0
    // Predicated region
    $region2: #{tpu_custom_call.1} parent=1 // pred_check
      _
    $region3: #{tpu_custom_call.1} parent=1 // pred_check_branch
      %12 = sbr.rel (0) target = $region5
    $region4: #{tpu_custom_call.1} parent=1 // pred_region
      %s14 = ssub.s32 256, 256
      %15 = vsyncadd [#allocation3], %s14
      %s16 = sshll.u32 [#allocation2], 4
      %s17 = int_to_ptr.vmem [resolvable:$true] %s16
      %22 = dma.hbm_to_vmem [thread:$0]  %s0, 256, %s17, [#allocation3], 128, 128, 8
    $region5: #{tpu_custom_call.1} parent=1 // pred_fallthru
      _
    // Predicated region
    $region6: #{tpu_custom_call.1} parent=1 // pred_check
      _
    $region7: #{tpu_custom_call.1} parent=1 // pred_check_branch
      %24 = sbr.rel (0) target = $region9
    $region8: #{tpu_custom_call.1} parent=1 // pred_region
      _
    $region9: #{tpu_custom_call.1} parent=1 // pred_fallthru
      _
    // Predicated region
    $region10: #{tpu_custom_call.1} parent=1 // pred_check
      _
    $region11: #{tpu_custom_call.1} parent=1 // pred_check_branch
      %26 = sbr.rel (0) target = $region13
    $region12: #{tpu_custom_call.1} parent=1 // pred_region
      %s28 = ssub.s32 512, 512
      %29 = vsyncadd [#allocation6], %s28
      %s30 = sshll.u32 [#allocation5], 4
      %s31 = int_to_ptr.vmem [resolvable:$true] %s30
      %36 = dma.hbm_to_vmem [thread:$0]  %s2, 512, %s31, [#allocation6], 128, 128, 8
    $region13: #{tpu_custom_call.1} parent=1 // pred_fallthru
      _
    // Predicated region
    $region14: #{tpu_custom_call.1} parent=1 // pred_check
      _
    $region15: #{tpu_custom_call.1} parent=1 // pred_check_branch
      %38 = sbr.rel (0) target = $region17
    $region16: #{tpu_custom_call.1} parent=1 // pred_region
      %39 = dma.done [#allocation3], 256
    $region17: #{tpu_custom_call.1} parent=1 // pred_fallthru
      _
    // Predicated region
    $region18: #{tpu_custom_call.1} parent=1 // pred_check
      _
    $region19: #{tpu_custom_call.1} parent=1 // pred_check_branch
      %41 = sbr.rel (0) target = $region21
    $region20: #{tpu_custom_call.1} parent=1 // pred_region
      %42 = dma.done [#allocation6], 512
    $region21: #{tpu_custom_call.1} parent=1 // pred_fallthru
      _
    %v43 = vld [vmem:[#allocation2] sm:$0xff]
    %v44 = vld [vmem:[#allocation2 + $0x8] sm:$0xff]
    %v45 = vmul.f32 %v43, %v43
    %v46 = vmul.f32 %v44, %v44
    %vm47 = vcmask 261120
    %v48 = vsel %vm47, %v45, 0.0
    %49 = vadd.xlane.f32.xlu0 %v48
    %v50 = vpop.xlane.xlu0 %49
    %v51 = vsel %vm47, %v46, 0.0
    %52 = vadd.xlane.f32.xlu0 %v51
    %v53 = vpop.xlane.xlu0 %52
    %v54 = vrcp.pop 32.0
    %v55 = vmul.f32 %v50, %v54
    %v56 = vmul.f32 %v53, %v54
    %v57 = vadd.f32 %v55, 1e-05
    %v58 = vadd.f32 %v56, 1e-05
    %v59 = vrsqrt.pop %v57
    %v60 = vrsqrt.pop %v58
    %v61 = vmul.f32 %v43, %v59
    %v62 = vmul.f32 %v44, %v60
    %v63 = vld [vmem:[%s1] sm:$0x1]
    %v65 = vlaneseq
    %v66 = vshrl.u32 %v65, 7
    %v67 = vsub.s32 0, %v66
    %v68 = vrot.slane %v63, %v67
    %v70 = vmul.f32 %v61, %v68
    %v71 = vmul.f32 %v62, %v68
    %v72 = vld [vmem:[#allocation5] sm:$0xff]
    %v73 = vld [vmem:[#allocation5 + $0x8] sm:$0xff]
    %v74 = vld [vmem:[#allocation5 + $0x10] sm:$0xff]
    %v75 = vld [vmem:[#allocation5 + $0x18] sm:$0xff]
    %v77 = vsel %vm47, %v70, 0
    %v80 = vsel %vm47, %v71, 0
    %82 = vmatprep.subr.mxu0 0.0
    %83 = vmatpush1.msra.mxu0 0.0
    %84 = vmatprep.subr.mxu0 0.0
    %85 = vmatpush1.msra.mxu0 0.0
    %86 = vmatprep.subr.mxu0 0.0
    %87 = vmatpush1.msra.mxu0 0.0
    %88 = vmatprep.subr.mxu0 0.0
    %89 = vmatpush1.msra.mxu0 0.0
    %90 = vmatprep.subr.mxu0 0.0
    %91 = vmatpush1.msra.mxu0 0.0
    %92 = vmatprep.subr.mxu0 0.0
    %93 = vmatpush1.msra.mxu0 0.0
    %94 = vmatprep.subr.mxu0 0.0
    %95 = vmatpush1.msra.mxu0 0.0
    %96 = vmatprep.subr.mxu0 0.0
    %97 = vmatpush1.msra.mxu0 0.0
    %98 = vmatprep.subr.mxu0 0.0
    %99 = vmatpush1.msra.mxu0 0.0
    %100 = vmatprep.subr.mxu0 0.0
    %101 = vmatpush1.msra.mxu0 0.0
    %102 = vmatprep.subr.mxu0 0.0
    %103 = vmatpush1.msra.mxu0 0.0
    %104 = vmatprep.subr.mxu0 0.0
    %105 = vmatpush1.msra.mxu0 0.0
    %106 = vmatprep.subr.mxu0 0.0
    %107 = vmatpush1.msra.mxu0 %v75
    %108 = vmatprep.subr.mxu0 0.0
    %109 = vmatpush1.msra.mxu0 %v74
    %110 = vmatprep.subr.mxu0 0.0
    %111 = vmatpush1.msra.mxu0 %v73
    %112 = vmatprep.subr.mxu0 0.0
    %113 = vmatpush1.msra.mxu0 %v72
    %114 = vmatprep.subr.mxu0 0.0
    %115 = vmatpush2.msra.mxu0 0.0
    %116 = vmatprep.subr.mxu0 0.0
    %117 = vmatpush2.msra.mxu0 0.0
    %118 = vmatprep.subr.mxu0 0.0
    %119 = vmatpush2.msra.mxu0 0.0
    %120 = vmatprep.subr.mxu0 0.0
    %121 = vmatpush2.msra.mxu0 0.0
    %122 = vmatprep.subr.mxu0 0.0
    %123 = vmatpush2.msra.mxu0 0.0
    %124 = vmatprep.subr.mxu0 0.0
    %125 = vmatpush2.msra.mxu0 0.0
    %126 = vmatprep.subr.mxu0 0.0
    %127 = vmatpush2.msra.mxu0 0.0
    %128 = vmatprep.subr.mxu0 0.0
    %129 = vmatpush2.msra.mxu0 0.0
    %130 = vmatprep.subr.mxu0 0.0
    %131 = vmatpush2.msra.mxu0 0.0
    %132 = vmatprep.subr.mxu0 0.0
    %133 = vmatpush2.msra.mxu0 0.0
    %134 = vmatprep.subr.mxu0 0.0
    %135 = vmatpush2.msra.mxu0 0.0
    %136 = vmatprep.subr.mxu0 0.0
    %137 = vmatpush2.msra.mxu0 0.0
    %138 = vmatprep.subr.mxu0 0.0
    %139 = vmatpush2.msra.mxu0 0.0
    %140 = vmatprep.subr.mxu0 0.0
    %141 = vmatpush2.msra.mxu0 0.0
    %142 = vmatprep.subr.mxu0 0.0
    %143 = vmatpush2.msra.mxu0 0.0
    %144 = vmatprep.subr.mxu0 0.0
    %145 = vmatpush2.msra.mxu0 0.0
    %146 = vmatprep.mubr.f32.mxu0 0.0
    %147 = vmatmul.mubr.f32.gmra.mxu0 %v77
    %v148 = vpop.f32.mrf.mxu0
    %v149 = vadd.f32 0.0, %v148
    %v150 = vpop.f32.mrf.mxu0
    %151 = vmatprep.mubr.f32.mxu0 0.0
    %152 = vmatmul.mubr.f32.gmra.mxu0 %v80
    %v153 = vpop.f32.mrf.mxu0
    %v154 = vadd.f32 0.0, %v153
    %v155 = vpop.f32.mrf.mxu0
    %156 = vdwg.mxu0
    %vm157 = vcmask 785408
    %158 = vst.msk [vmem:[#allocation7] sm:$0xff] %vm157, %v149
    %159 = vst.msk [vmem:[#allocation7 + $0x8] sm:$0xff] %vm157, %v154
    // Predicated region
    $region22: #{tpu_custom_call.1} parent=1 // pred_check
      _
    $region23: #{tpu_custom_call.1} parent=1 // pred_check_branch
      %161 = sbr.rel (0) target = $region25
    $region24: #{tpu_custom_call.1} parent=1 // pred_region
      %s163 = ssub.s32 256, 256
      %164 = vsyncadd [#allocation4], %s163
      %s165 = sshll.u32 [#allocation7], 4
      %s166 = int_to_ptr.vmem [resolvable:$true] %s165
      %171 = dma.vmem_to_hbm [thread:$0]  %s166, 256, %s3, [#allocation4], 128, 128, 8
    $region25: #{tpu_custom_call.1} parent=1 // pred_fallthru
      _
    // Predicated region
    $region26: #{tpu_custom_call.1} parent=1 // pred_check
      _
    $region27: #{tpu_custom_call.1} parent=1 // pred_check_branch
      %173 = sbr.rel (0) target = $region29
    $region28: #{tpu_custom_call.1} parent=1 // pred_region
      %174 = dma.done [#allocation4], 256
    $region29: #{tpu_custom_call.1} parent=1 // pred_fallthru
      _
    %175 = vsyncpa [#allocation3], 1
    %176 = vsyncpa [#allocation6], 1
    %177 = vsyncpa [#allocation4], 1

</llo_original>
